<compile_context>
chip_gen: v6e
topology: v6e:2x2x1
jax: 0.10.0
libtpu: 0.0.40
codegen_flags: <defaults>
</compile_context>

<pallas_src>
import functools

import jax
import jax.numpy as jnp
from jax.experimental import pallas as pl
from jax.experimental.pallas import tpu as pltpu

LANES = 128
SUBLANES = 8
MAX_TILE_ROWS = 4096            # 4096x128 f32 = 2 MiB / input / pipeline buf.
VMEM_LIMIT_BYTES = 32 * 1024 * 1024


def _cdiv(a, b):
    return -(-a // b)


# ----------------------------------------------------------------------------
# Kernel: modified focal loss partial sums.
# Accumulates lane-wise partials [loss_sum, num_pos] into rows 0..1 of an
# (8, 128) output block that stays resident across the reduction axis.
# ----------------------------------------------------------------------------
def _focal_kernel(pred_ref, gt_ref, out_ref, *, tile_rows, num_blocks,
                  total_rows, needs_mask):
    c = pl.program_id(0)
    i = pl.program_id(1)

    @pl.when(i == 0)
    def _():
        out_ref[...] = jnp.zeros_like(out_ref)

    pred = pred_ref[...].astype(jnp.float32)
    gt = gt_ref[...].astype(jnp.float32)

    def accum(pred, gt):
        is_pos = gt == 1.0
        omp = 1.0 - pred
        # Single EUP push per element; select-before-log keeps the argument in
        # (0, 1) so masked-out / out-of-range values can never reach jnp.log.
        logv = jnp.log(jnp.where(is_pos, pred, omp))
        omg = 1.0 - gt
        omg2 = omg * omg
        # pos/neg weights merged into one per-element loss term (pos_sum == 0
        # whenever num_pos == 0, so the final formula only needs loss_sum and
        # num_pos).  gt > 1 (neutral pad value) gets weight 0.
        neg_w = jnp.where(gt < 1.0, (pred * pred) * (omg2 * omg2), 0.0)
        w = jnp.where(is_pos, omp * omp, neg_w)
        loss = logv * w
        cnt = is_pos.astype(jnp.float32)
        # Sublane-only reductions per step (2 RMW rows, down from 3); the
        # cross-lane sums happen once in XLA.
        out_ref[0:1, :] += jnp.sum(loss, axis=0, keepdims=True)
        out_ref[1:2, :] += jnp.sum(cnt, axis=0, keepdims=True)

    if not needs_mask:
        accum(pred, gt)
    else:
        # Only the very last grid step can be ragged: gate the mask there
        # instead of paying iota + selects on every step.
        is_last = jnp.logical_and(c == pl.num_programs(0) - 1,
                                  i == pl.num_programs(1) - 1)

        @pl.when(jnp.logical_not(is_last))
        def _():
            accum(pred, gt)

        @pl.when(is_last)
        def _():
            row_start = (num_blocks - 1) * tile_rows          # static
            rows_left = total_rows - row_start
            # Column iota broadcast over lanes (cheaper than a full-tile iota).
            row_ids = jax.lax.broadcasted_iota(jnp.int32, (tile_rows, 1), 0)
            valid = row_ids < rows_left
            accum(jnp.where(valid, pred, 0.5), jnp.where(valid, gt, 2.0))


def _focal_tail_xla(pred, gt):
    """Per-element focal terms for the tiny (< 128 elem) XLA-handled tail."""
    pred = pred.astype(jnp.float32)
    gt = gt.astype(jnp.float32)
    is_pos = gt == 1.0
    logv = jnp.log(jnp.where(is_pos, pred, 1.0 - pred))
    neg_w = jnp.where(gt < 1.0, pred * pred * (1.0 - gt) ** 4, 0.0)
    w = jnp.where(is_pos, (1.0 - pred) ** 2, neg_w)
    return jnp.sum(logv * w), jnp.sum(is_pos.astype(jnp.float32))


def modified_focal_loss_pallas(pred_hm, gt_hm):
    pred_flat = pred_hm.reshape(-1)    # free metadata op (contiguous input)
    gt_flat = gt_hm.reshape(-1)
    n = pred_flat.shape[0]

    rows = n // LANES
    rem = n - rows * LANES

    loss_sum = jnp.float32(0.0)
    num_pos = jnp.float32(0.0)

    if rem:
        # Rare non-lane-multiple path: sum the < 128 leftover elements in XLA
        # instead of materialising a padded copy of both heatmaps.
        t_loss, t_pos = _focal_tail_xla(pred_flat[rows * LANES:],
                                        gt_flat[rows * LANES:])
        loss_sum += t_loss
        num_pos += t_pos

    if rows > 0:
        pred_main = pred_flat if rem == 0 else pred_flat[:rows * LANES]
        gt_main = gt_flat if rem == 0 else gt_flat[:rows * LANES]
        pred2 = pred_main.reshape(rows, LANES)
        gt2 = gt_main.reshape(rows, LANES)

        if rows <= MAX_TILE_ROWS:
            tile_rows = rows                 # single full-array block
            num_blocks = 1
            n_outer, inner_blocks = 1, 1
        else:
            # Force an even block count so the leading "parallel" grid axis can
            # always split the reduction across both v7x TensorCores.
            num_blocks = _cdiv(rows, MAX_TILE_ROWS)
            num_blocks += num_blocks % 2
            while True:
                tile_rows = _cdiv(_cdiv(rows, num_blocks), SUBLANES) * SUBLANES
                # Keep every block at least partially in-bounds.
                if num_blocks <= 2 or (num_blocks - 1) * tile_rows < rows:
                    break
                num_blocks -= 2
            n_outer, inner_blocks = 2, num_blocks // 2
        needs_mask = num_blocks * tile_rows != rows

        kernel = functools.partial(
            _focal_kernel, tile_rows=tile_rows, num_blocks=num_blocks,
            total_rows=rows, needs_mask=needs_mask)

        in_spec = pl.BlockSpec((tile_rows, LANES),
                               lambda c, i: (c * inner_blocks + i, 0))
        # TODO(synk): on v7x, if an xprof trace shows exposed input DMA after
        # the tile-size increase, bump in_specs to pipeline_mode=pl.Buffered(3).

        itemsize = jnp.dtype(pred_hm.dtype).itemsize
        out = pl.pallas_call(
            kernel,
            out_shape=jax.ShapeDtypeStruct((n_outer * SUBLANES, LANES),
                                           jnp.float32),
            grid_spec=pltpu.PrefetchScalarGridSpec(
                num_scalar_prefetch=0,
                grid=(n_outer, inner_blocks),
                in_specs=[in_spec, in_spec],
                out_specs=pl.BlockSpec((SUBLANES, LANES), lambda c, i: (c, 0)),
            ),
            compiler_params=pltpu.CompilerParams(
                # TODO(synk): confirm in a trace that "parallel" engages both
                # v7x TensorCores; switch to pltpu.CORE_PARALLEL if it does not.
                dimension_semantics=("parallel", "arbitrary"),
                vmem_limit_bytes=VMEM_LIMIT_BYTES),
            cost_estimate=pl.CostEstimate(
                flops=10 * rows * LANES,
                transcendentals=rows * LANES,
                bytes_accessed=2 * rows * LANES * itemsize
                + n_outer * SUBLANES * LANES * 4),
        )(pred2, gt2)

        out = out.reshape(n_outer, SUBLANES, LANES)
        loss_sum += jnp.sum(out[:, 0, :])
        num_pos += jnp.sum(out[:, 1, :])

    # Safe denominator keeps the untaken branch NaN-free if ever differentiated.
    den = jnp.maximum(num_pos, 1.0)
    return jnp.where(num_pos == 0.0, -loss_sum, -loss_sum / den)


# ----------------------------------------------------------------------------
# Loss forward (mirrors Loss.forward).
# ----------------------------------------------------------------------------
class LossConfig:
    down_stride = 4
    loss_alpha = 1.0
    loss_beta = 0.1
    loss_gamma = 1.0


def loss_forward(pred, gt, cfg):
    pred_hm, pred_wh, pred_offset = pred
    imgs, gt_boxes, gt_classes, gt_hm, ct = gt  # ct: (B, K, 2) padded centers

    B = pred_hm.shape[0]
    K = gt_classes.shape[1]

    cls_loss = modified_focal_loss_pallas(pred_hm, gt_hm)

    valid = gt_classes > 0                                   # (B, K)
    num = jnp.sum(valid.astype(jnp.float32))                 # total #objects

    ct = ct.astype(jnp.float32)
    ct_int = ct.astype(jnp.int32)                            # trunc (ct >= 0)
    xs = ct_int[..., 0]
    ys = ct_int[..., 1]

    # TODO(synk): the data-dependent gather at center locations has no clean
    # BlockSpec expression, and the (B*2*K)-element masked-L1 reduction is far
    # below one vreg, so both stay in XLA where they fuse; a dedicated Pallas
    # call here would be pure launch overhead.
    b_idx = jnp.arange(B)[:, None, None]
    c_idx = jnp.arange(2)[None, :, None]
    y_idx = ys[:, None, :]
    x_idx = xs[:, None, :]
    pred_wh_g = pred_wh[b_idx, c_idx, y_idx, x_idx]          # (B, 2, K)
    pred_off_g = pred_offset[b_idx, c_idx, y_idx, x_idx]     # (B, 2, K)

    wh_tgt = jnp.stack(
        [gt_boxes[..., 2] - gt_boxes[..., 0],
         gt_boxes[..., 3] - gt_boxes[..., 1]], axis=1
    ) / float(cfg.down_stride)                               # (B, 2, K)
    off_tgt = jnp.transpose(ct - ct_int.astype(jnp.float32), (0, 2, 1))  # (B,2,K)

    mask = valid[:, None, :].astype(jnp.float32)             # (B, 1, K)

    wh_loss = jnp.sum(jnp.abs(pred_wh_g - wh_tgt) * mask)
    offset_loss = jnp.sum(jnp.abs(pred_off_g - off_tgt) * mask)

    regr_loss = wh_loss * cfg.loss_beta + offset_loss * cfg.loss_gamma
    return cls_loss * cfg.loss_alpha, regr_loss / (num + 1e-6)


# ----------------------------------------------------------------------------
# Pure-JAX reference (for correctness check).
# ----------------------------------------------------------------------------
def _ref_focal(pred, gt):
    pred = pred.astype(jnp.float32)
    gt = gt.astype(jnp.float32)
    pos = (gt == 1.0).astype(jnp.float32)
    neg = (gt < 1.0).astype(jnp.float32)
    pos_loss = jnp.log(pred) * (1.0 - pred) ** 2 * pos
    neg_loss = jnp.log(1.0 - pred) * pred ** 2 * (1.0 - gt) ** 4 * neg
    num_pos = pos.sum()
    return jnp.where(num_pos == 0.0, -neg_loss.sum(),
                     -(pos_loss.sum() + neg_loss.sum()) / num_pos)


def reference_loss(pred, gt, cfg):
    pred_hm, pred_wh, pred_offset = pred
    imgs, gt_boxes, gt_classes, gt_hm, ct = gt
    B = pred_hm.shape[0]
    K = gt_classes.shape[1]

    cls_loss = _ref_focal(pred_hm, gt_hm)
    valid = gt_classes > 0
    num = jnp.sum(valid.astype(jnp.float32))

    ct = ct.astype(jnp.float32)
    ct_int = ct.astype(jnp.int32)
    b_idx = jnp.arange(B)[:, None, None]
    c_idx = jnp.arange(2)[None, :, None]
    y_idx = ct_int[..., 1][:, None, :]
    x_idx = ct_int[..., 0][:, None, :]
    pwh = pred_wh[b_idx, c_idx, y_idx, x_idx]
    poff = pred_offset[b_idx, c_idx, y_idx, x_idx]
    wh_tgt = jnp.stack([gt_boxes[..., 2] - gt_boxes[..., 0],
                        gt_boxes[..., 3] - gt_boxes[..., 1]], axis=1) / cfg.down_stride
    off_tgt = jnp.transpose(ct - ct_int.astype(jnp.float32), (0, 2, 1))
    m = jnp.broadcast_to(valid[:, None, :], (B, 2, K)).astype(jnp.float32)
    wh_loss = jnp.sum(jnp.abs(pwh - wh_tgt) * m)
    off_loss = jnp.sum(jnp.abs(poff - off_tgt) * m)
    regr = wh_loss * cfg.loss_beta + off_loss * cfg.loss_gamma
    return cls_loss * cfg.loss_alpha, regr / (num + 1e-6)


# ----------------------------------------------------------------------------
if __name__ == "__main__":
    cfg = LossConfig()
    B, C, Hs, Ws, K = 2, 4, 16, 16, 5  # heatmap-resolution spatial dims

    key = jax.random.PRNGKey(0)
    (k1, k2, k3, k4, k5, k6, k7, k8, k9, k10, k11, k12) = jax.random.split(key, 12)

    pred_hm = jax.nn.sigmoid(jax.random.normal(k1, (B, C, Hs, Ws), jnp.float32))
    pred_wh = 2.0 * jax.random.normal(k2, (B, 2, Hs, Ws), jnp.float32)
    pred_offset = jax.nn.sigmoid(jax.random.normal(k3, (B, 2, Hs, Ws), jnp.float32))

    gt_classes = jnp.array([[1, 2, 3, 0, 0], [2, 1, 0, 0, 0]], jnp.int32)  # (B, K)
    valid_np = jax.device_get(gt_classes > 0)

    ct = jax.random.uniform(k4, (B, K, 2), jnp.float32, minval=0.0, maxval=Hs - 1.0)
    ct = ct * (gt_classes > 0)[..., None]  # zero out padded entries

    x1y1 = jax.random.uniform(k5, (B, K, 2), jnp.float32, minval=0.0, maxval=30.0)
    whbx = jax.random.uniform(k6, (B, K, 2), jnp.float32, minval=4.0, maxval=30.0)
    gt_boxes = jnp.concatenate([x1y1, x1y1 + whbx], axis=-1)  # (B, K, 4)

    gt_hm = 0.9 * jax.random.uniform(k7, (B, C, Hs, Ws), jnp.float32)
    ct_host = jax.device_get(ct)
    cls_host = jax.device_get(gt_classes)
    for b in range(B):
        for k in range(K):
            if valid_np[b, k]:
                c = int(cls_host[b, k]) - 1
                x = int(ct_host[b, k, 0])
                y = int(ct_host[b, k, 1])
                gt_hm = gt_hm.at[b, c, y, x].set(1.0)

    imgs = jax.random.normal(k8, (B, 3, Hs * cfg.down_stride, Ws * cfg.down_stride),
                             jnp.float32)

    pred = (pred_hm, pred_wh, pred_offset)
    gt = (imgs, gt_boxes, gt_classes, gt_hm, ct)

    # --- Full forward pass (single-block focal path) ---
    cls_loss, regr_loss = loss_forward(pred, gt, cfg)
    jax.block_until_ready((cls_loss, regr_loss))

    ref_cls, ref_regr = reference_loss(pred, gt, cfg)
    assert jnp.allclose(cls_loss, ref_cls, rtol=1e-4, atol=1e-4), (cls_loss, ref_cls)
    assert jnp.allclose(regr_loss, ref_regr, rtol=1e-4, atol=1e-4), (regr_loss, ref_regr)

    # --- Multi-block / parallel-axis / gated ragged-tail focal path ---
    big_shape = (2, 9, 131, 256)  # 603648 elems -> 4716 rows -> 2 blocks, ragged
    big_pred = jax.nn.sigmoid(jax.random.normal(k9, big_shape, jnp.float32))
    big_gt = 0.9 * jax.random.uniform(k10, big_shape, jnp.float32)
    big_gt = (big_gt.at[0, 0, 0, 0].set(1.0).at[1, 3, 50, 60].set(1.0)
                    .at[0, 5, 100, 200].set(1.0).at[1, 8, 130, 17].set(1.0))
    big_focal = modified_focal_loss_pallas(big_pred, big_gt)
    jax.block_until_ready(big_focal)
    big_ref = _ref_focal(big_pred, big_gt)
    assert jnp.allclose(big_focal, big_ref, rtol=2e-4, atol=1e-2), (big_focal, big_ref)

    # --- Non-lane-multiple (kernel + XLA tail) focal path ---
    odd_shape = (2, 3, 5, 7)  # 210 elems -> 1 kernel row + 82-elem XLA tail
    odd_pred = jax.nn.sigmoid(jax.random.normal(k11, odd_shape, jnp.float32))
    odd_gt = 0.9 * jax.random.uniform(k12, odd_shape, jnp.float32)
    odd_gt = odd_gt.at[0, 1, 2, 3].set(1.0)
    odd_focal = modified_focal_loss_pallas(odd_pred, odd_gt)
    jax.block_until_ready(odd_focal)
    odd_ref = _ref_focal(odd_pred, odd_gt)
    assert jnp.allclose(odd_focal, odd_ref, rtol=1e-4, atol=1e-4), (odd_focal, odd_ref)

    # --- Sub-one-row (pure-XLA fallback) focal path ---
    tiny_shape = (1, 1, 5, 7)  # 35 elems -> 0 kernel rows
    tiny_pred = jax.nn.sigmoid(jax.random.normal(k11, tiny_shape, jnp.float32))
    tiny_gt = (0.9 * jax.random.uniform(k12, tiny_shape, jnp.float32)
               ).at[0, 0, 1, 1].set(1.0)
    tiny_focal = modified_focal_loss_pallas(tiny_pred, tiny_gt)
    jax.block_until_ready(tiny_focal)
    tiny_ref = _ref_focal(tiny_pred, tiny_gt)
    assert jnp.allclose(tiny_focal, tiny_ref, rtol=1e-4, atol=1e-4), (tiny_focal, tiny_ref)

    print("KERNEL_OK")
</pallas_src>

<mosaic_0001>
module attributes {stable_mosaic.version = 11 : i64} {
  func.func @_focal_kernel(%arg0: i32, %arg1: i32, %arg2: memref<16x128xf32, #tpu.memory_space<vmem>>, %arg3: memref<16x128xf32, #tpu.memory_space<vmem>>, %arg4: memref<8x128xf32, #tpu.memory_space<vmem>>) attributes {dimension_semantics = [#tpu.dimension_semantics<parallel>, #tpu.dimension_semantics<arbitrary>], iteration_bounds = array<i64: 1, 1>, scalar_prefetch = 0 : i64, scratch_operands = 0 : i64, tpu.core_type = #tpu.core_type<tc>, window_params = [{transform_indices = @transform_0, window_bounds = array<i64: 16, 128>}, {transform_indices = @transform_1, window_bounds = array<i64: 16, 128>}, {transform_indices = @transform_2, window_bounds = array<i64: 8, 128>}]} {
    %c0_i32 = arith.constant 0 : i32
    %0 = arith.cmpi eq, %arg1, %c0_i32 : i32
    %1 = arith.extui %0 : i1 to i32
    %c0_i32_0 = arith.constant 0 : i32
    %2 = arith.cmpi ne, %1, %c0_i32_0 : i32
    scf.if %2 {
      %cst_17 = arith.constant 0.000000e+00 : f32
      %36 = vector.broadcast %cst_17 : f32 to vector<8x128xf32>
      %c0_18 = arith.constant 0 : index
      %c0_19 = arith.constant 0 : index
      %37 = vector.load %arg4[%c0_18, %c0_19] : memref<8x128xf32, #tpu.memory_space<vmem>>, vector<8x128xf32>
      tpu.vector_store %arg4[%c0_18, %c0_19], %36 {strides = array<i32>} : memref<8x128xf32, #tpu.memory_space<vmem>>, vector<8x128xf32>,
    } else {
    }
    %c0 = arith.constant 0 : index
    %c0_1 = arith.constant 0 : index
    %3 = vector.load %arg2[%c0, %c0_1] : memref<16x128xf32, #tpu.memory_space<vmem>>, vector<16x128xf32>
    %c0_2 = arith.constant 0 : index
    %c0_3 = arith.constant 0 : index
    %4 = vector.load %arg3[%c0_2, %c0_3] : memref<16x128xf32, #tpu.memory_space<vmem>>, vector<16x128xf32>
    %cst = arith.constant 1.000000e+00 : f32
    %5 = vector.broadcast %cst : f32 to vector<16x128xf32>
    %6 = arith.cmpf oeq, %4, %5 : vector<16x128xf32>
    %cst_4 = arith.constant 1.000000e+00 : f32
    %7 = vector.broadcast %cst_4 : f32 to vector<16x128xf32>
    %8 = arith.subf %7, %3 : vector<16x128xf32>
    %9 = arith.select %6, %3, %8 : vector<16x128xi1>, vector<16x128xf32>
    %10 = math.log %9 : vector<16x128xf32>
    %cst_5 = arith.constant 1.000000e+00 : f32
    %11 = vector.broadcast %cst_5 : f32 to vector<16x128xf32>
    %12 = arith.subf %11, %4 : vector<16x128xf32>
    %13 = arith.mulf %12, %12 : vector<16x128xf32>
    %cst_6 = arith.constant 1.000000e+00 : f32
    %14 = vector.broadcast %cst_6 : f32 to vector<16x128xf32>
    %15 = arith.cmpf olt, %4, %14 : vector<16x128xf32>
    %16 = arith.mulf %3, %3 : vector<16x128xf32>
    %17 = arith.mulf %13, %13 : vector<16x128xf32>
    %18 = arith.mulf %16, %17 : vector<16x128xf32>
    %cst_7 = arith.constant 0.000000e+00 : f32
    %19 = vector.broadcast %cst_7 : f32 to vector<16x128xf32>
    %20 = arith.select %15, %18, %19 : vector<16x128xi1>, vector<16x128xf32>
    %21 = arith.mulf %8, %8 : vector<16x128xf32>
    %22 = arith.select %6, %21, %20 : vector<16x128xi1>, vector<16x128xf32>
    %23 = arith.mulf %10, %22 : vector<16x128xf32>
    %24 = arith.extui %6 : vector<16x128xi1> to vector<16x128xi32>
    %25 = arith.sitofp %24 : vector<16x128xi32> to vector<16x128xf32>
    %c0_8 = arith.constant 0 : index
    %c0_9 = arith.constant 0 : index
    %26 = vector.load %arg4[%c0_8, %c0_9] : memref<8x128xf32, #tpu.memory_space<vmem>>, vector<1x128xf32>
    %cst_10 = arith.constant dense<0.000000e+00> : vector<128xf32>
    %27 = vector.multi_reduction <add>, %23, %cst_10 [0] : vector<16x128xf32> to vector<128xf32>
    %28 = vector.shape_cast %27 : vector<128xf32> to vector<1x128xf32>
    %29 = arith.addf %26, %28 : vector<1x128xf32>
    %c0_11 = arith.constant 0 : index
    %c0_12 = arith.constant 0 : index
    %30 = vector.load %arg4[%c0_11, %c0_12] : memref<8x128xf32, #tpu.memory_space<vmem>>, vector<1x128xf32>
    tpu.vector_store %arg4[%c0_11, %c0_12], %29 {strides = array<i32>} : memref<8x128xf32, #tpu.memory_space<vmem>>, vector<1x128xf32>,
    %c1 = arith.constant 1 : index
    %c0_13 = arith.constant 0 : index
    %31 = vector.load %arg4[%c1, %c0_13] : memref<8x128xf32, #tpu.memory_space<vmem>>, vector<1x128xf32>
    %cst_14 = arith.constant dense<0.000000e+00> : vector<128xf32>
    %32 = vector.multi_reduction <add>, %25, %cst_14 [0] : vector<16x128xf32> to vector<128xf32>
    %33 = vector.shape_cast %32 : vector<128xf32> to vector<1x128xf32>
    %34 = arith.addf %31, %33 : vector<1x128xf32>
    %c1_15 = arith.constant 1 : index
    %c0_16 = arith.constant 0 : index
    %35 = vector.load %arg4[%c1_15, %c0_16] : memref<8x128xf32, #tpu.memory_space<vmem>>, vector<1x128xf32>
    tpu.vector_store %arg4[%c1_15, %c0_16], %34 {strides = array<i32>} : memref<8x128xf32, #tpu.memory_space<vmem>>, vector<1x128xf32>,
    return
  }
  func.func @transform_0(%arg0: i32, %arg1: i32) -> (i32, i32) {
    %c1_i32 = arith.constant 1 : i32
    %0 = arith.muli %arg0, %c1_i32 : i32
    %1 = arith.addi %0, %arg1 : i32
    %c0_i32 = arith.constant 0 : i32
    %c0_i32_0 = arith.constant 0 : i32
    return %1, %c0_i32 : i32, i32
  }
  func.func @transform_1(%arg0: i32, %arg1: i32) -> (i32, i32) {
    %c1_i32 = arith.constant 1 : i32
    %0 = arith.muli %arg0, %c1_i32 : i32
    %1 = arith.addi %0, %arg1 : i32
    %c0_i32 = arith.constant 0 : i32
    %c0_i32_0 = arith.constant 0 : i32
    return %1, %c0_i32 : i32, i32
  }
  func.func @transform_2(%arg0: i32, %arg1: i32) -> (i32, i32) {
    %c0_i32 = arith.constant 0 : i32
    %c0_i32_0 = arith.constant 0 : i32
    return %arg0, %c0_i32 : i32, i32
  }
}

</mosaic_0001>

<llo_original>
// kernel: tpu_custom_call.1
$region0: #{tpu_custom_call.1}
  #allocation0 [shape = 'u32[]', space=smem, size = 0x4, offset = 0x4, fixed_abs, tag = 'smem constant byte address 0x4 - core index']
  #allocation1 [shape = 'u32[144,128]{1,0:T(1,128)}', space=vmem, size = 0x12000, scoped, tag = 'internal scratch']
  %s0 = inlined_call_operand.hbm [shape: f32[16,128], index: 0, kind: input, shape index: {}]
  %s1 = inlined_call_operand.hbm [shape: f32[16,128], index: 1, kind: input, shape index: {}]
  %s2 = inlined_call_operand.hbm [shape: f32[8,128], index: 2, kind: output, shape index: {}]
  %s3 = sld [smem:[#allocation0]]
  $region30: #{tpu_custom_call.1} parent=0
    _
  %s5 = ssub.s32 1, %s3
  %s6 = scalar_select 0, %s5, %s3
  $region1: #{tpu_custom_call.1} parent=0
    #allocation2 [shape = 'u8[8192]{0}', space=vmem, size = 0x2000, scoped, tag = 'input window, operand 0, single buffered']
    #allocation3 [shape = 's32[1]{0}', space=sflag, size = 0x4, scoped, tag = 'scoped memory for tpu_custom_call.1']
    #allocation4 [shape = 's32[1]{0}', space=sflag, size = 0x4, scoped, tag = 'scoped memory for tpu_custom_call.1']
    #allocation5 [shape = 'u8[8192]{0}', space=vmem, size = 0x2000, scoped, tag = 'input window, operand 1, single buffered']
    #allocation6 [shape = 's32[1]{0}', space=sflag, size = 0x4, scoped, tag = 'scoped memory for tpu_custom_call.1']
    #allocation7 [shape = 'u8[4096]{0}', space=vmem, size = 0x1000, scoped, tag = 'output window, operand 0, single buffered']
    %7 = vsyncpa [#allocation3], 0
    %8 = vsyncpa [#allocation6], 0
    %9 = vsyncpa [#allocation4], 0
    // Predicated region
    $region2: #{tpu_custom_call.1} parent=1 // pred_check
      _
    $region3: #{tpu_custom_call.1} parent=1 // pred_check_branch
      %11 = sbr.rel (0) target = $region5
    $region4: #{tpu_custom_call.1} parent=1 // pred_region
      %s12 = sadd.s32 0, 0
      %s13 = smul.u32 2, %s12
      %s15 = ssub.s32 256, 256
      %16 = vsyncadd [#allocation3], %s15
      %s17 = smul.addr %s13, 128
      %s18 = scalar_lea.hbm %s0, %s17
      %s19 = sshll.u32 [#allocation2], 4
      %s20 = int_to_ptr.vmem [resolvable:$true] %s19
      %25 = dma.hbm_to_vmem [thread:$0]  %s18, 256, %s20, [#allocation3], 128, 128, 8
    $region5: #{tpu_custom_call.1} parent=1 // pred_fallthru
      _
    // Predicated region
    $region6: #{tpu_custom_call.1} parent=1 // pred_check
      _
    $region7: #{tpu_custom_call.1} parent=1 // pred_check_branch
      %27 = sbr.rel (0) target = $region9
    $region8: #{tpu_custom_call.1} parent=1 // pred_region
      %s28 = sadd.s32 0, 0
      %s29 = smul.u32 2, %s28
      %s31 = ssub.s32 256, 256
      %32 = vsyncadd [#allocation6], %s31
      %s33 = smul.addr %s29, 128
      %s34 = scalar_lea.hbm %s1, %s33
      %s35 = sshll.u32 [#allocation5], 4
      %s36 = int_to_ptr.vmem [resolvable:$true] %s35
      %41 = dma.hbm_to_vmem [thread:$0]  %s34, 256, %s36, [#allocation6], 128, 128, 8
    $region9: #{tpu_custom_call.1} parent=1 // pred_fallthru
      _
    // Predicated region
    $region10: #{tpu_custom_call.1} parent=1 // pred_check
      _
    $region11: #{tpu_custom_call.1} parent=1 // pred_check_branch
      %43 = sbr.rel (0) target = $region13
    $region12: #{tpu_custom_call.1} parent=1 // pred_region
      %44 = dma.done [#allocation3], 256
    $region13: #{tpu_custom_call.1} parent=1 // pred_fallthru
      _
    // Predicated region
    $region14: #{tpu_custom_call.1} parent=1 // pred_check
      _
    $region15: #{tpu_custom_call.1} parent=1 // pred_check_branch
      %46 = sbr.rel (0) target = $region17
    $region16: #{tpu_custom_call.1} parent=1 // pred_region
      %47 = dma.done [#allocation6], 256
    $region17: #{tpu_custom_call.1} parent=1 // pred_fallthru
      _
    %s48 = sadd.s32 0, 0
    %s49 = smul.u32 2, %s48
    %s50 = sadd.s32 0, 0
    %s51 = smul.u32 2, %s50
    %p52 = scmp.eq.s32.totalorder 0, 0
    // Predicated region
    $region18: #{tpu_custom_call.1} parent=1 // pred_check
      %p53 = pneg %p52
    $region19: #{tpu_custom_call.1} parent=1 // pred_check_branch
      %55 = sbr.rel (%p53) target = $region21
    $region20: #{tpu_custom_call.1} parent=1 // pred_region
      %56 = vst [vmem:[#allocation7] sm:$0xff] 0.0
    $region21: #{tpu_custom_call.1} parent=1 // pred_fallthru
      _
    %v57 = vld [vmem:[#allocation2] sm:$0xff]
    %v58 = vld [vmem:[#allocation2 + $0x8] sm:$0xff]
    %v59 = vld [vmem:[#allocation5] sm:$0xff]
    %v60 = vld [vmem:[#allocation5 + $0x8] sm:$0xff]
    %vm61 = vcmp.eq.f32.partialorder %v59, 1.0
    %vm62 = vcmp.eq.f32.partialorder %v60, 1.0
    %v63 = vsub.f32 1.0, %v57
    %v64 = vsub.f32 1.0, %v58
    %v65 = vsel %vm61, %v57, %v63
    %v66 = vsel %vm62, %v58, %v64
    %v67 = vlog2.pop %v65
    %v68 = vmul.f32 %v67, 0.6931472
    %v69 = vlog2.pop %v66
    %v70 = vmul.f32 %v69, 0.6931472
    %v71 = vsub.f32 1.0, %v59
    %v72 = vsub.f32 1.0, %v60
    %v73 = vmul.f32 %v71, %v71
    %v74 = vmul.f32 %v72, %v72
    %vm75 = vcmp.lt.f32.partialorder %v59, 1.0
    %vm76 = vcmp.lt.f32.partialorder %v60, 1.0
    %v77 = vmul.f32 %v57, %v57
    %v78 = vmul.f32 %v58, %v58
    %v79 = vmul.f32 %v73, %v73
    %v80 = vmul.f32 %v74, %v74
    %v81 = vmul.f32 %v77, %v79
    %v82 = vmul.f32 %v78, %v80
    %v83 = vsel %vm75, %v81, 0.0
    %v84 = vsel %vm76, %v82, 0.0
    %v85 = vmul.f32 %v63, %v63
    %v86 = vmul.f32 %v64, %v64
    %v87 = vsel %vm61, %v85, %v83
    %v88 = vsel %vm62, %v86, %v84
    %v89 = vmul.f32 %v68, %v87
    %v90 = vmul.f32 %v70, %v88
    %v91 = vsel %vm61, 1, 0
    %v92 = vsel %vm62, 1, 0
    %v93 = vcvt.s32.f32 %v91
    %v94 = vcvt.s32.f32 %v92
    %v95 = vld [vmem:[#allocation7] sm:$0x1]
    %v96 = vadd.f32 %v89, %v90
    %v97 = vrot.slane %v96, 4
    %v98 = vadd.f32 %v96, %v97
    %v99 = vrot.slane %v98, 2
    %v100 = vadd.f32 %v98, %v99
    %v101 = vrot.slane %v100, 1
    %v102 = vadd.f32 %v100, %v101
    %v103 = vadd.f32 %v95, %v102
    %104 = vst [vmem:[#allocation7] sm:$0x1] %v103
    %v105 = vld [vmem:[#allocation7 + $0x1] sm:$0x1]
    %v106 = vadd.f32 %v93, %v94
    %v107 = vrot.slane %v106, 4
    %v108 = vadd.f32 %v106, %v107
    %v109 = vrot.slane %v108, 2
    %v110 = vadd.f32 %v108, %v109
    %v111 = vrot.slane %v110, 1
    %v112 = vadd.f32 %v110, %v111
    %v113 = vadd.f32 %v105, %v112
    %114 = vst [vmem:[#allocation7 + $0x1] sm:$0x1] %v113
    // Predicated region
    $region22: #{tpu_custom_call.1} parent=1 // pred_check
      _
    $region23: #{tpu_custom_call.1} parent=1 // pred_check_branch
      %116 = sbr.rel (0) target = $region25
    $region24: #{tpu_custom_call.1} parent=1 // pred_region
      %s118 = ssub.s32 128, 128
      %119 = vsyncadd [#allocation4], %s118
      %s121 = sshll.u32 [#allocation7], 4
      %s122 = int_to_ptr.vmem [resolvable:$true] %s121
      %124 = dma.vmem_to_hbm [thread:$0]  %s122, 128, %s2, [#allocation4]
    $region25: #{tpu_custom_call.1} parent=1 // pred_fallthru
      _
    // Predicated region
    $region26: #{tpu_custom_call.1} parent=1 // pred_check
      _
    $region27: #{tpu_custom_call.1} parent=1 // pred_check_branch
      %126 = sbr.rel (0) target = $region29
    $region28: #{tpu_custom_call.1} parent=1 // pred_region
      %127 = dma.done [#allocation4], 128
    $region29: #{tpu_custom_call.1} parent=1 // pred_fallthru
      _
    %128 = vsyncpa [#allocation3], 1
    %129 = vsyncpa [#allocation6], 1
    %130 = vsyncpa [#allocation4], 1

</llo_original>
